<compile_context>
chip_gen: v7x
topology: tpu7x:2x2x1
jax: 0.10.0
libtpu: 0.0.40
codegen_flags: <defaults>
</compile_context>

<pallas_src>
import jax
import jax.numpy as jnp
from jax.experimental import pallas as pl
from jax.experimental.pallas import tpu as pltpu
from typing import NamedTuple

NEG_SLOPE = 0.01   # nn.LeakyReLU default negative_slope
LANE = 128
SUBLANE = 8


def _round_up(x, m):
    return (x + m - 1) // m * m


def _vmem_capacity_bytes():
    try:
        return int(pltpu.get_tpu_info().vmem_capacity_bytes)
    except Exception:
        return 64 * 1024 * 1024  # conservative fallback (v7x-sized VMEM)


def _vmem_budget_bytes(capacity):
    if capacity <= 64 * 1024 * 1024:
        # v7x-class: 64 MiB physical per TC -> leave ~8 MiB headroom, never 64.
        return capacity - 8 * 1024 * 1024
    # v5e / v6e (128 MiB): use up to ~100 MiB, keep headroom for internal scratch.
    return min(capacity - 24 * 1024 * 1024, 100 * 1024 * 1024)


def _tile_footprint_bytes(tm, tk, tn, m_pad):
    """Double-buffered VMEM bytes for one grid step's tiles."""
    return 2 * (tm * m_pad * 2      # x tile (bf16), resident across j, k
                + m_pad * tk * 2    # W1 column block (bf16)
                + tk * 4            # b1 block (f32)
                + tk * tn * 2       # W2 block (bf16)
                + tn * 4            # b2 block (f32)
                + tm * tn * 4)      # output tile (f32, accumulated in place)


def _choose_tiles(m_pad, o_pad_lane, tm_max, budget):
    """Pick (TM, TK, TN): start maximal, shrink until double-buffered tiles fit."""
    tm = _round_up(max(tm_max, SUBLANE), SUBLANE)
    tk = m_pad          # prefer full contraction tile (fewer accumulator RMW passes)
    tn = o_pad_lane     # prefer a single output-column tile when it fits

    while _tile_footprint_bytes(tm, tk, tn, m_pad) > budget:
        n_bytes = tn * (2 * tk + 4 * tm)       # W2 + out contribution
        m_bytes = tm * (2 * m_pad + 4 * tn)    # x + out contribution
        k_bytes = tk * 2 * (m_pad + tn)        # W1 + W2 contribution (de-prioritised)
        if tn > LANE and n_bytes >= m_bytes and n_bytes >= k_bytes // 2:
            tn = _round_up(tn // 2, LANE)
        elif tm > SUBLANE and m_bytes >= k_bytes // 2:
            tm = _round_up(tm // 2, SUBLANE)
        elif tk > LANE:
            tk = _round_up(tk // 2, LANE)
        elif tn > LANE:
            tn = _round_up(tn // 2, LANE)
        elif tm > SUBLANE:
            tm = _round_up(tm // 2, SUBLANE)
        else:
            break
    return tm, tk, tn


class DecoderParams(NamedTuple):
    w1: jax.Array        # (M_pad, H_pad) bf16
    b1: jax.Array        # (1, H_pad)    f32
    w2: jax.Array        # (H_pad, O_pad) bf16
    b2: jax.Array        # (1, O_pad)    f32
    middle_size: int
    output_size: int
    m_pad: int
    h_pad: int
    o_pad: int
    tk: int
    tn: int
    tm_max: int
    vmem_capacity: int


def prepare_decoder_layer(w1, b1, w2, b2, *, max_block_batch=1024, vmem_capacity=None):
    """One-time param prep: pad to lane-dense tiles and cast to bf16 (hoisted
    out of the per-forward path). Weights are stored as [in, out] so the kernel
    computes x @ W + b directly on the MXU."""
    if vmem_capacity is None:
        vmem_capacity = _vmem_capacity_bytes()
    budget = _vmem_budget_bytes(vmem_capacity)

    m = w1.shape[0]
    o = w2.shape[1]
    m_pad = _round_up(m, LANE)
    o_pad_lane = _round_up(o, LANE)

    tm_max, tk, tn = _choose_tiles(m_pad, o_pad_lane, max_block_batch, budget)

    # Pad hidden / output dims UP to a multiple of the chosen tile instead of
    # shrinking the tile: the extra zero rows/cols contribute nothing.
    h_pad = _round_up(m_pad, tk)
    o_pad = _round_up(o_pad_lane, tn)

    w1p = jnp.pad(w1.astype(jnp.bfloat16), ((0, m_pad - m), (0, h_pad - m)))
    b1p = jnp.pad(b1.astype(jnp.float32).reshape(1, -1), ((0, 0), (0, h_pad - m)))
    w2p = jnp.pad(w2.astype(jnp.bfloat16), ((0, h_pad - m), (0, o_pad - o)))
    b2p = jnp.pad(b2.astype(jnp.float32).reshape(1, -1), ((0, 0), (0, o_pad - o)))

    return DecoderParams(w1p, b1p, w2p, b2p, m, o, m_pad, h_pad, o_pad,
                         tk, tn, tm_max, vmem_capacity)


def decoder_layer_kernel(x_ref, w1_ref, b1_ref, w2_ref, b2_ref, o_ref):
    k = pl.program_id(2)

    @pl.when(k == 0)
    def _init():
        # Seed the resident output block with the layer-2 bias and accumulate
        # straight into o_ref (no separate f32 scratch accumulator).
        o_ref[...] = jnp.broadcast_to(b2_ref[...], o_ref.shape)

    # Layer 1 partial hidden block: (TM, TK) = x(TM, M_pad) @ W1[:, k](M_pad, TK).
    h = jnp.dot(x_ref[...], w1_ref[...], preferred_element_type=jnp.float32)
    h = h + b1_ref[...]                  # (1, TK) bias broadcast, f32 on the VPU
    h = jnp.maximum(h, NEG_SLOPE * h)    # LeakyReLU (valid since 0 < slope < 1)

    # Layer 2: this hidden block's contribution to the (TM, TN) output tile.
    o_ref[...] += jnp.dot(h.astype(w2_ref.dtype), w2_ref[...],
                          preferred_element_type=jnp.float32)


def decoder_layer(x, params: DecoderParams):
    """x: [..., middle_size] -> [..., output_size] (f32)."""
    lead = x.shape[:-1]
    m = params.middle_size
    o = params.output_size
    assert x.shape[-1] == m, "last dim of x must equal middle_size"

    x2 = x.reshape(-1, m)
    batch = x2.shape[0]

    m_pad, h_pad, o_pad = params.m_pad, params.h_pad, params.o_pad
    tk, tn = params.tk, params.tn

    tm = min(params.tm_max, _round_up(batch, SUBLANE))
    b_pad = _round_up(batch, tm)

    # v7x has two TensorCores: make sure the 'parallel' axes have >= 2 grid
    # points when the batch is big enough to split (no effect on v5e/v6e).
    if (params.vmem_capacity <= 64 * 1024 * 1024
            and (b_pad // tm) * (o_pad // tn) < 2
            and batch >= 2 * SUBLANE):
        tm = _round_up(pl.cdiv(b_pad, 2), SUBLANE)
        b_pad = _round_up(batch, tm)

    # Only x is touched per call; skip the pad entirely when already aligned.
    xb = x2.astype(jnp.bfloat16)
    if b_pad != batch or m_pad != m:
        xb = jnp.pad(xb, ((0, b_pad - batch), (0, m_pad - m)))

    n_i = b_pad // tm
    n_j = o_pad // tn
    n_k = h_pad // tk
    grid = (n_i, n_j, n_k)

    footprint = _tile_footprint_bytes(tm, tk, tn, m_pad)
    vmem_limit = int(min(_vmem_budget_bytes(params.vmem_capacity),
                         max(footprint + (2 << 20), 16 << 20)))

    cost = pl.CostEstimate(
        flops=2 * b_pad * m_pad * h_pad * n_j + 2 * b_pad * h_pad * o_pad,
        transcendentals=0,
        bytes_accessed=(b_pad * m_pad * 2                  # x, once per batch tile
                        + n_i * n_j * m_pad * h_pad * 2    # W1, re-streamed per (i, j)
                        + n_i * n_j * h_pad * 4            # b1
                        + n_i * h_pad * o_pad * 2          # W2, re-streamed per batch tile
                        + n_i * o_pad * 4                  # b2
                        + b_pad * o_pad * 4),              # output
    )

    out_pad = pl.pallas_call(
        decoder_layer_kernel,
        out_shape=jax.ShapeDtypeStruct((b_pad, o_pad), jnp.float32),
        grid_spec=pltpu.PrefetchScalarGridSpec(
            num_scalar_prefetch=0,
            grid=grid,
            in_specs=[
                pl.BlockSpec((tm, m_pad), lambda i, j, k: (i, 0)),  # x: resident over j, k
                pl.BlockSpec((m_pad, tk), lambda i, j, k: (0, k)),  # W1 column block
                pl.BlockSpec((1, tk),     lambda i, j, k: (0, k)),  # b1 block
                pl.BlockSpec((tk, tn),    lambda i, j, k: (k, j)),  # W2 block
                pl.BlockSpec((1, tn),     lambda i, j, k: (0, j)),  # b2 block
            ],
            out_specs=pl.BlockSpec((tm, tn), lambda i, j, k: (i, j)),
        ),
        compiler_params=pltpu.CompilerParams(
            dimension_semantics=("parallel", "parallel", "arbitrary"),
            vmem_limit_bytes=vmem_limit,
        ),
        cost_estimate=cost,
    )(xb, params.w1, params.b1, params.w2, params.b2)

    return out_pad[:batch, :o].reshape(*lead, o)


def init_linear_params(key, in_features, out_features, dtype=jnp.float32):
    """Mimic torch.nn.Linear default init: U(-1/sqrt(in), 1/sqrt(in))."""
    kw, kb = jax.random.split(key)
    bound = 1.0 / (in_features ** 0.5)
    # stored transposed: [in_features, out_features]
    w = jax.random.uniform(kw, (in_features, out_features), dtype,
                           minval=-bound, maxval=bound)
    b = jax.random.uniform(kb, (out_features,), dtype,
                           minval=-bound, maxval=bound)
    return w, b


def reference_f32(x, w1, b1, w2, b2):
    h = x @ w1 + b1
    h = jnp.where(h > 0, h, NEG_SLOPE * h)
    return h @ w2 + b2


def reference_bf16_matched(x, w1, b1, w2, b2):
    """Same precision path as the kernel: bf16 matmul inputs, f32 accumulation."""
    xb, w1b, w2b = (a.astype(jnp.bfloat16) for a in (x, w1, w2))
    h = jnp.dot(xb, w1b, preferred_element_type=jnp.float32) + b1
    h = jnp.where(h > 0, h, NEG_SLOPE * h)
    return jnp.dot(h.astype(jnp.bfloat16), w2b,
                   preferred_element_type=jnp.float32) + b2


if __name__ == "__main__":
    batch = 8
    middle_size = 32
    output_size = 16

    key = jax.random.PRNGKey(0)
    kx, k1, k2 = jax.random.split(key, 3)

    x = jax.random.normal(kx, (batch, middle_size), jnp.float32)
    w1, b1 = init_linear_params(k1, middle_size, middle_size)
    w2, b2 = init_linear_params(k2, middle_size, output_size)

    params = prepare_decoder_layer(w1, b1, w2, b2)
    out = decoder_layer(x, params)
    out = jax.block_until_ready(out)

    assert out.shape == (batch, output_size)
    assert out.dtype == jnp.float32

    # Exact check against a reference using the same bf16-matmul/f32-accum path.
    ref_matched = reference_bf16_matched(x, w1, b1, w2, b2)
    assert jnp.allclose(out, ref_matched, atol=1e-4, rtol=1e-4), \
        "mismatch vs precision-matched reference"

    # Loose sanity check against the full-f32 PyTorch-equivalent forward.
    # TODO(synk): if strict f32 parity is required, keep h / weights in f32
    # (slower MXU path) instead of bf16 inputs with f32 accumulation.
    ref = reference_f32(x, w1, b1, w2, b2)
    assert jnp.allclose(out, ref, atol=5e-2, rtol=5e-2), \
        "mismatch vs f32 reference"

    print("KERNEL_OK")
</pallas_src>

<mosaic_0001>
module attributes {stable_mosaic.version = 11 : i64} {
  func.func @decoder_layer_kernel(%arg0: i32, %arg1: i32, %arg2: i32, %arg3: memref<8x128xbf16, #tpu.memory_space<vmem>>, %arg4: memref<128x128xbf16, #tpu.memory_space<vmem>>, %arg5: memref<1x128xf32, #tpu.memory_space<vmem>>, %arg6: memref<128x128xbf16, #tpu.memory_space<vmem>>, %arg7: memref<1x128xf32, #tpu.memory_space<vmem>>, %arg8: memref<8x128xf32, #tpu.memory_space<vmem>>) attributes {dimension_semantics = [#tpu.dimension_semantics<parallel>, #tpu.dimension_semantics<parallel>, #tpu.dimension_semantics<arbitrary>], iteration_bounds = array<i64: 1, 1, 1>, scalar_prefetch = 0 : i64, scratch_operands = 0 : i64, tpu.core_type = #tpu.core_type<tc>, window_params = [{transform_indices = @transform_0, window_bounds = array<i64: 8, 128>}, {transform_indices = @transform_1, window_bounds = array<i64: 128, 128>}, {transform_indices = @transform_2, window_bounds = array<i64: 1, 128>}, {transform_indices = @transform_3, window_bounds = array<i64: 128, 128>}, {transform_indices = @transform_4, window_bounds = array<i64: 1, 128>}, {transform_indices = @transform_5, window_bounds = array<i64: 8, 128>}]} {
    %c0_i32 = arith.constant 0 : i32
    %0 = arith.cmpi eq, %arg2, %c0_i32 : i32
    %1 = arith.extui %0 : i1 to i32
    %c0_i32_0 = arith.constant 0 : i32
    %2 = arith.cmpi ne, %1, %c0_i32_0 : i32
    scf.if %2 {
      %c0_14 = arith.constant 0 : index
      %c0_15 = arith.constant 0 : index
      %18 = vector.load %arg7[%c0_14, %c0_15] : memref<1x128xf32, #tpu.memory_space<vmem>>, vector<1x128xf32>
      %19 = vector.shape_cast %18 : vector<1x128xf32> to vector<1x128xf32>
      %20 = vector.broadcast %19 : vector<1x128xf32> to vector<8x128xf32>
      %c0_16 = arith.constant 0 : index
      %c0_17 = arith.constant 0 : index
      %21 = vector.load %arg8[%c0_16, %c0_17] : memref<8x128xf32, #tpu.memory_space<vmem>>, vector<8x128xf32>
      tpu.vector_store %arg8[%c0_16, %c0_17], %20 {strides = array<i32>} : memref<8x128xf32, #tpu.memory_space<vmem>>, vector<8x128xf32>,
    } else {
    }
    %c0 = arith.constant 0 : index
    %c0_1 = arith.constant 0 : index
    %3 = vector.load %arg3[%c0, %c0_1] : memref<8x128xbf16, #tpu.memory_space<vmem>>, vector<8x128xbf16>
    %c0_2 = arith.constant 0 : index
    %c0_3 = arith.constant 0 : index
    %4 = vector.load %arg4[%c0_2, %c0_3] : memref<128x128xbf16, #tpu.memory_space<vmem>>, vector<128x128xbf16>
    %cst = arith.constant dense<0.000000e+00> : vector<8x128xf32>
    %5 = tpu.matmul %3, %4, %cst {dimension_numbers = #tpu.dot_dimension_numbers<[1], [0], [0], [1], [0, 0, 1, 1], [], []>} : vector<8x128xbf16>, vector<128x128xbf16>, vector<8x128xf32> -> vector<8x128xf32>
    %c0_4 = arith.constant 0 : index
    %c0_5 = arith.constant 0 : index
    %6 = vector.load %arg5[%c0_4, %c0_5] : memref<1x128xf32, #tpu.memory_space<vmem>>, vector<1x128xf32>
    %7 = vector.broadcast %6 : vector<1x128xf32> to vector<8x128xf32>
    %8 = arith.addf %5, %7 : vector<8x128xf32>
    %cst_6 = arith.constant 0.00999999977 : f32
    %9 = vector.broadcast %cst_6 : f32 to vector<8x128xf32>
    %10 = arith.mulf %9, %8 : vector<8x128xf32>
    %11 = arith.maximumf %8, %10 : vector<8x128xf32>
    %c0_7 = arith.constant 0 : index
    %c0_8 = arith.constant 0 : index
    %12 = vector.load %arg8[%c0_7, %c0_8] : memref<8x128xf32, #tpu.memory_space<vmem>>, vector<8x128xf32>
    %13 = arith.truncf %11 : vector<8x128xf32> to vector<8x128xbf16>
    %c0_9 = arith.constant 0 : index
    %c0_10 = arith.constant 0 : index
    %14 = vector.load %arg6[%c0_9, %c0_10] : memref<128x128xbf16, #tpu.memory_space<vmem>>, vector<128x128xbf16>
    %cst_11 = arith.constant dense<0.000000e+00> : vector<8x128xf32>
    %15 = tpu.matmul %13, %14, %cst_11 {dimension_numbers = #tpu.dot_dimension_numbers<[1], [0], [0], [1], [0, 0, 1, 1], [], []>} : vector<8x128xbf16>, vector<128x128xbf16>, vector<8x128xf32> -> vector<8x128xf32>
    %16 = arith.addf %12, %15 : vector<8x128xf32>
    %c0_12 = arith.constant 0 : index
    %c0_13 = arith.constant 0 : index
    %17 = vector.load %arg8[%c0_12, %c0_13] : memref<8x128xf32, #tpu.memory_space<vmem>>, vector<8x128xf32>
    tpu.vector_store %arg8[%c0_12, %c0_13], %16 {strides = array<i32>} : memref<8x128xf32, #tpu.memory_space<vmem>>, vector<8x128xf32>,
    return
  }
  func.func @transform_0(%arg0: i32, %arg1: i32, %arg2: i32) -> (i32, i32) {
    %c0_i32 = arith.constant 0 : i32
    %c0_i32_0 = arith.constant 0 : i32
    return %arg0, %c0_i32 : i32, i32
  }
  func.func @transform_1(%arg0: i32, %arg1: i32, %arg2: i32) -> (i32, i32) {
    %c0_i32 = arith.constant 0 : i32
    %c0_i32_0 = arith.constant 0 : i32
    return %c0_i32, %arg2 : i32, i32
  }
  func.func @transform_2(%arg0: i32, %arg1: i32, %arg2: i32) -> (i32, i32) {
    %c0_i32 = arith.constant 0 : i32
    %c0_i32_0 = arith.constant 0 : i32
    return %c0_i32, %arg2 : i32, i32
  }
  func.func @transform_3(%arg0: i32, %arg1: i32, %arg2: i32) -> (i32, i32) {
    %c0_i32 = arith.constant 0 : i32
    return %arg2, %arg1 : i32, i32
  }
  func.func @transform_4(%arg0: i32, %arg1: i32, %arg2: i32) -> (i32, i32) {
    %c0_i32 = arith.constant 0 : i32
    %c0_i32_0 = arith.constant 0 : i32
    return %c0_i32, %arg1 : i32, i32
  }
  func.func @transform_5(%arg0: i32, %arg1: i32, %arg2: i32) -> (i32, i32) {
    %c0_i32 = arith.constant 0 : i32
    return %arg0, %arg1 : i32, i32
  }
}

</mosaic_0001>

<llo_original>
// kernel: tpu_custom_call.1
$region0: #{tpu_custom_call.1}
  #allocation0 [shape = 'u32[]', space=smem, size = 0x4, offset = 0x4, fixed_abs, tag = 'smem constant byte address 0x4 - core index']
  #allocation1 [shape = 'u32[144,128]{1,0:T(1,128)}', space=vmem, size = 0x12000, scoped, tag = 'internal scratch']
  %s0 = inlined_call_operand.hbm [shape: bf16[8,128], index: 0, kind: input, shape index: {}]
  %s1 = inlined_call_operand.hbm [shape: bf16[128,128], index: 1, kind: input, shape index: {}]
  %s2 = inlined_call_operand.vmem [shape: f32[1,128], index: 2, kind: input, shape index: {}]
  %s3 = inlined_call_operand.hbm [shape: bf16[128,128], index: 3, kind: input, shape index: {}]
  %s4 = inlined_call_operand.vmem [shape: f32[1,128], index: 4, kind: input, shape index: {}]
  %s5 = inlined_call_operand.hbm [shape: f32[8,128], index: 5, kind: output, shape index: {}]
  %s6 = sld [smem:[#allocation0]]
  $region46: #{tpu_custom_call.1} parent=0
    _
  %s8 = ssub.s32 1, %s6
  %s9 = scalar_select 0, %s8, %s6
  $region1: #{tpu_custom_call.1} parent=0
    #allocation2 [shape = 'u8[2048]{0}', space=vmem, size = 0x800, scoped, tag = 'input window, operand 0, single buffered']
    #allocation3 [shape = 's32[1]{0}', space=sflag, size = 0x4, scoped, tag = 'scoped memory for tpu_custom_call.1']
    #allocation4 [shape = 's32[1]{0}', space=sflag, size = 0x4, scoped, tag = 'scoped memory for tpu_custom_call.1']
    #allocation5 [shape = 'u8[32768]{0}', space=vmem, size = 0x8000, scoped, tag = 'input window, operand 1, single buffered']
    #allocation6 [shape = 's32[1]{0}', space=sflag, size = 0x4, scoped, tag = 'scoped memory for tpu_custom_call.1']
    #allocation7 [shape = 'u8[32768]{0}', space=vmem, size = 0x8000, scoped, tag = 'input window, operand 3, single buffered']
    #allocation8 [shape = 'u8[4096]{0}', space=vmem, size = 0x1000, scoped, tag = 'output window, operand 0, single buffered']
    %10 = vsyncpa [#allocation3], 0
    %11 = vsyncpa [#allocation6], 0
    %12 = vsyncpa [#allocation4], 0
    // Predicated region
    $region2: #{tpu_custom_call.1} parent=1 // pred_check
      _
    $region3: #{tpu_custom_call.1} parent=1 // pred_check_branch
      %14 = sbr.rel (0) target = $region5
    $region4: #{tpu_custom_call.1} parent=1 // pred_region
      %s16 = ssub.s32 64, 64
      %17 = vsyncadd [#allocation3], %s16
      %s19 = sshll.u32 [#allocation2], 4
      %s20 = int_to_ptr.vmem [resolvable:$true] %s19
      %22 = dma.hbm_to_vmem [thread:$0]  %s0, 64, %s20, [#allocation3]
    $region5: #{tpu_custom_call.1} parent=1 // pred_fallthru
      _
    // Predicated region
    $region6: #{tpu_custom_call.1} parent=1 // pred_check
      _
    $region7: #{tpu_custom_call.1} parent=1 // pred_check_branch
      %24 = sbr.rel (0) target = $region9
    $region8: #{tpu_custom_call.1} parent=1 // pred_region
      %s26 = ssub.s32 1024, 1024
      %27 = vsyncadd [#allocation6], %s26
      %s28 = sshll.u32 [#allocation5], 4
      %s29 = int_to_ptr.vmem [resolvable:$true] %s28
      %34 = dma.hbm_to_vmem [thread:$0]  %s1, 1024, %s29, [#allocation6], 64, 64, 4
    $region9: #{tpu_custom_call.1} parent=1 // pred_fallthru
      _
    // Predicated region
    $region10: #{tpu_custom_call.1} parent=1 // pred_check
      _
    $region11: #{tpu_custom_call.1} parent=1 // pred_check_branch
      %36 = sbr.rel (0) target = $region13
    $region12: #{tpu_custom_call.1} parent=1 // pred_region
      _
    $region13: #{tpu_custom_call.1} parent=1 // pred_fallthru
      _
    // Predicated region
    $region14: #{tpu_custom_call.1} parent=1 // pred_check
      _
    $region15: #{tpu_custom_call.1} parent=1 // pred_check_branch
      %38 = sbr.rel (0) target = $region17
    $region16: #{tpu_custom_call.1} parent=1 // pred_region
      %s40 = ssub.s32 1024, 1024
      %41 = vsyncadd [#allocation6], %s40
      %s42 = sshll.u32 [#allocation7], 4
      %s43 = int_to_ptr.vmem [resolvable:$true] %s42
      %48 = dma.hbm_to_vmem [thread:$0]  %s3, 1024, %s43, [#allocation6], 64, 64, 4
    $region17: #{tpu_custom_call.1} parent=1 // pred_fallthru
      _
    // Predicated region
    $region18: #{tpu_custom_call.1} parent=1 // pred_check
      _
    $region19: #{tpu_custom_call.1} parent=1 // pred_check_branch
      %50 = sbr.rel (0) target = $region21
    $region20: #{tpu_custom_call.1} parent=1 // pred_region
      _
    $region21: #{tpu_custom_call.1} parent=1 // pred_fallthru
      _
    // Predicated region
    $region22: #{tpu_custom_call.1} parent=1 // pred_check
      _
    $region23: #{tpu_custom_call.1} parent=1 // pred_check_branch
      %52 = sbr.rel (0) target = $region25
    $region24: #{tpu_custom_call.1} parent=1 // pred_region
      %53 = dma.done [#allocation3], 64
    $region25: #{tpu_custom_call.1} parent=1 // pred_fallthru
      _
    // Predicated region
    $region26: #{tpu_custom_call.1} parent=1 // pred_check
      _
    $region27: #{tpu_custom_call.1} parent=1 // pred_check_branch
      %55 = sbr.rel (0) target = $region29
    $region28: #{tpu_custom_call.1} parent=1 // pred_region
      %56 = dma.done [#allocation6], 1024
    $region29: #{tpu_custom_call.1} parent=1 // pred_fallthru
      _
    // Predicated region
    $region30: #{tpu_custom_call.1} parent=1 // pred_check
      _
    $region31: #{tpu_custom_call.1} parent=1 // pred_check_branch
      %58 = sbr.rel (0) target = $region33
    $region32: #{tpu_custom_call.1} parent=1 // pred_region
      %59 = dma.done [#allocation6], 1024
    $region33: #{tpu_custom_call.1} parent=1 // pred_fallthru
      _
    %p61 = scmp.eq.s32.totalorder 0, 0
    // Predicated region
    $region34: #{tpu_custom_call.1} parent=1 // pred_check
      %p62 = pneg %p61
    $region35: #{tpu_custom_call.1} parent=1 // pred_check_branch
      %64 = sbr.rel (%p62) target = $region37
    $region36: #{tpu_custom_call.1} parent=1 // pred_region
      %v65 = vld [vmem:[%s4] sm:$0x1]
      %v67 = vlaneseq
      %v68 = vshrl.u32 %v67, 7
      %v69 = vsub.s32 0, %v68
      %v70 = vrot.slane %v65, %v69
      %72 = vst [vmem:[#allocation8] sm:$0xff] %v70
    $region37: #{tpu_custom_call.1} parent=1 // pred_fallthru
      _
    %v73 = vld [vmem:[#allocation2] sm:$0xf]
    %v74 = vld [vmem:[#allocation5] sm:$0xf]
    %v75 = vld [vmem:[#allocation5 + $0x4] sm:$0xf]
    %v76 = vld [vmem:[#allocation5 + $0x8] sm:$0xf]
    %v77 = vld [vmem:[#allocation5 + $0xc] sm:$0xf]
    %v78 = vld [vmem:[#allocation5 + $0x10] sm:$0xf]
    %v79 = vld [vmem:[#allocation5 + $0x14] sm:$0xf]
    %v80 = vld [vmem:[#allocation5 + $0x18] sm:$0xf]
    %v81 = vld [vmem:[#allocation5 + $0x1c] sm:$0xf]
    %v82 = vld [vmem:[#allocation5 + $0x20] sm:$0xf]
    %v83 = vld [vmem:[#allocation5 + $0x24] sm:$0xf]
    %v84 = vld [vmem:[#allocation5 + $0x28] sm:$0xf]
    %v85 = vld [vmem:[#allocation5 + $0x2c] sm:$0xf]
    %v86 = vld [vmem:[#allocation5 + $0x30] sm:$0xf]
    %v87 = vld [vmem:[#allocation5 + $0x34] sm:$0xf]
    %v88 = vld [vmem:[#allocation5 + $0x38] sm:$0xf]
    %v89 = vld [vmem:[#allocation5 + $0x3c] sm:$0xf]
    %v90 = vld [vmem:[%s2] sm:$0x1]
    %v92 = vlaneseq
    %v93 = vshrl.u32 %v92, 7
    %v94 = vsub.s32 0, %v93
    %v95 = vrot.slane %v90, %v94
    %v113 = vunpack.c.l.b16 %v74
    %v114 = vunpack.c.l.b16 %v75
    %v115 = vunpack.c.l.b16 %v76
    %v116 = vunpack.c.l.b16 %v77
    %v117 = vunpack.c.l.b16 %v78
    %v118 = vunpack.c.l.b16 %v79
    %v119 = vunpack.c.l.b16 %v80
    %v120 = vunpack.c.l.b16 %v81
    %v121 = vunpack.c.l.b16 %v82
    %v122 = vunpack.c.l.b16 %v83
    %v123 = vunpack.c.l.b16 %v84
    %v124 = vunpack.c.l.b16 %v85
    %v125 = vunpack.c.l.b16 %v86
    %v126 = vunpack.c.l.b16 %v87
    %v127 = vunpack.c.l.b16 %v88
    %v128 = vunpack.c.l.b16 %v89
    %v129 = vpack.c.b16 %v114, %v113
    %v130 = vpack.c.b16 %v116, %v115
    %v131 = vpack.c.b16 %v118, %v117
    %v132 = vpack.c.b16 %v120, %v119
    %v133 = vpack.c.b16 %v122, %v121
    %v134 = vpack.c.b16 %v124, %v123
    %v135 = vpack.c.b16 %v126, %v125
    %v136 = vpack.c.b16 %v128, %v127
    %145 = vmatprep.subr.bf16.mxu0 0
    %146 = vmatpush1.bf16.msra.mxu0 %v129
    %147 = vmatprep.subr.bf16.mxu0 0
    %148 = vmatpush1.bf16.msra.mxu0 %v130
    %149 = vmatprep.subr.bf16.mxu0 0
    %150 = vmatpush1.bf16.msra.mxu0 %v131
    %151 = vmatprep.subr.bf16.mxu0 0
    %152 = vmatpush1.bf16.msra.mxu0 %v132
    %153 = vmatprep.subr.bf16.mxu0 0
    %154 = vmatpush1.bf16.msra.mxu0 %v133
    %155 = vmatprep.subr.bf16.mxu0 0
    %156 = vmatpush1.bf16.msra.mxu0 %v134
    %157 = vmatprep.subr.bf16.mxu0 0
    %158 = vmatpush1.bf16.msra.mxu0 %v135
    %159 = vmatprep.subr.bf16.mxu0 0
    %160 = vmatpush1.bf16.msra.mxu0 %v136
    %161 = vmatprep.subr.bf16.mxu0 0
    %162 = vmatpush1.bf16.msra.mxu0 0
    %163 = vmatprep.subr.bf16.mxu0 0
    %164 = vmatpush1.bf16.msra.mxu0 0
    %165 = vmatprep.subr.bf16.mxu0 0
    %166 = vmatpush1.bf16.msra.mxu0 0
    %167 = vmatprep.subr.bf16.mxu0 0
    %168 = vmatpush1.bf16.msra.mxu0 0
    %169 = vmatprep.subr.bf16.mxu0 0
    %170 = vmatpush1.bf16.msra.mxu0 0
    %171 = vmatprep.subr.bf16.mxu0 0
    %172 = vmatpush1.bf16.msra.mxu0 0
    %173 = vmatprep.subr.bf16.mxu0 0
    %174 = vmatpush1.bf16.msra.mxu0 0
    %175 = vmatprep.subr.bf16.mxu0 0
    %176 = vmatpush1.bf16.msra.mxu0 0
    %177 = vmatprep.mubr.bf16.mxu0 0
    %178 = vmatmul.mubr.bf16.gmra.mrb[0].mxu0 %v73
    %v179 = vpop.f32.mrb[0].mxu0
    %v180 = vadd.f32 %v95, %v179
    %v181 = vpop.f32.mrb[0].mxu0
    %v182 = vpop.f32.mrb[0].mxu0
    %v183 = vpop.f32.mrb[0].mxu0
    %184 = vdwg.mxu0
    %v185 = vmul.f32 %v180, 0.01
    %v186 = vmax.f32 %v180, %v185
    %v187 = vld [vmem:[#allocation8] sm:$0xff]
    %v188 = vpack.c.bf16 %v186, %v186
    %v189 = vld [vmem:[#allocation7] sm:$0xf]
    %v190 = vld [vmem:[#allocation7 + $0x4] sm:$0xf]
    %v191 = vld [vmem:[#allocation7 + $0x8] sm:$0xf]
    %v192 = vld [vmem:[#allocation7 + $0xc] sm:$0xf]
    %v193 = vld [vmem:[#allocation7 + $0x10] sm:$0xf]
    %v194 = vld [vmem:[#allocation7 + $0x14] sm:$0xf]
    %v195 = vld [vmem:[#allocation7 + $0x18] sm:$0xf]
    %v196 = vld [vmem:[#allocation7 + $0x1c] sm:$0xf]
    %v197 = vld [vmem:[#allocation7 + $0x20] sm:$0xf]
    %v198 = vld [vmem:[#allocation7 + $0x24] sm:$0xf]
    %v199 = vld [vmem:[#allocation7 + $0x28] sm:$0xf]
    %v200 = vld [vmem:[#allocation7 + $0x2c] sm:$0xf]
    %v201 = vld [vmem:[#allocation7 + $0x30] sm:$0xf]
    %v202 = vld [vmem:[#allocation7 + $0x34] sm:$0xf]
    %v203 = vld [vmem:[#allocation7 + $0x38] sm:$0xf]
    %v204 = vld [vmem:[#allocation7 + $0x3c] sm:$0xf]
    %v221 = vunpack.c.l.b16 %v189
    %v222 = vunpack.c.l.b16 %v190
    %v223 = vunpack.c.l.b16 %v191
    %v224 = vunpack.c.l.b16 %v192
    %v225 = vunpack.c.l.b16 %v193
    %v226 = vunpack.c.l.b16 %v194
    %v227 = vunpack.c.l.b16 %v195
    %v228 = vunpack.c.l.b16 %v196
    %v229 = vunpack.c.l.b16 %v197
    %v230 = vunpack.c.l.b16 %v198
    %v231 = vunpack.c.l.b16 %v199
    %v232 = vunpack.c.l.b16 %v200
    %v233 = vunpack.c.l.b16 %v201
    %v234 = vunpack.c.l.b16 %v202
    %v235 = vunpack.c.l.b16 %v203
    %v236 = vunpack.c.l.b16 %v204
    %v237 = vpack.c.b16 %v222, %v221
    %v238 = vpack.c.b16 %v224, %v223
    %v239 = vpack.c.b16 %v226, %v225
    %v240 = vpack.c.b16 %v228, %v227
    %v241 = vpack.c.b16 %v230, %v229
    %v242 = vpack.c.b16 %v232, %v231
    %v243 = vpack.c.b16 %v234, %v233
    %v244 = vpack.c.b16 %v236, %v235
    %253 = vmatprep.subr.bf16.mxu0 0
    %254 = vmatpush1.bf16.msra.mxu0 %v237
    %255 = vmatprep.subr.bf16.mxu0 0
    %256 = vmatpush1.bf16.msra.mxu0 %v238
    %257 = vmatprep.subr.bf16.mxu0 0
    %258 = vmatpush1.bf16.msra.mxu0 %v239
    %259 = vmatprep.subr.bf16.mxu0 0
    %260 = vmatpush1.bf16.msra.mxu0 %v240
    %261 = vmatprep.subr.bf16.mxu0 0
    %262 = vmatpush1.bf16.msra.mxu0 %v241
    %263 = vmatprep.subr.bf16.mxu0 0
    %264 = vmatpush1.bf16.msra.mxu0 %v242
    %265 = vmatprep.subr.bf16.mxu0 0
    %266 = vmatpush1.bf16.msra.mxu0 %v243
    %267 = vmatprep.subr.bf16.mxu0 0
    %268 = vmatpush1.bf16.msra.mxu0 %v244
    %269 = vmatprep.subr.bf16.mxu0 0
    %270 = vmatpush1.bf16.msra.mxu0 0
    %271 = vmatprep.subr.bf16.mxu0 0
    %272 = vmatpush1.bf16.msra.mxu0 0
    %273 = vmatprep.subr.bf16.mxu0 0
    %274 = vmatpush1.bf16.msra.mxu0 0
    %275 = vmatprep.subr.bf16.mxu0 0
    %276 = vmatpush1.bf16.msra.mxu0 0
    %277 = vmatprep.subr.bf16.mxu0 0
    %278 = vmatpush1.bf16.msra.mxu0 0
    %279 = vmatprep.subr.bf16.mxu0 0
    %280 = vmatpush1.bf16.msra.mxu0 0
    %281 = vmatprep.subr.bf16.mxu0 0
    %282 = vmatpush1.bf16.msra.mxu0 0
    %283 = vmatprep.subr.bf16.mxu0 0
    %284 = vmatpush1.bf16.msra.mxu0 0
    %285 = vmatprep.mubr.bf16.mxu0 0
    %286 = vmatmul.mubr.bf16.gmra.mrb[0].mxu0 %v188
    %v287 = vpop.f32.mrb[0].mxu0
    %v288 = vadd.f32 0.0, %v287
    %v289 = vpop.f32.mrb[0].mxu0
    %v290 = vpop.f32.mrb[0].mxu0
    %v291 = vpop.f32.mrb[0].mxu0
    %292 = vdwg.mxu0
    %v293 = vadd.f32 %v187, %v288
    %294 = vst [vmem:[#allocation8] sm:$0xff] %v293
    // Predicated region
    $region38: #{tpu_custom_call.1} parent=1 // pred_check
      _
    $region39: #{tpu_custom_call.1} parent=1 // pred_check_branch
      %296 = sbr.rel (0) target = $region41
    $region40: #{tpu_custom_call.1} parent=1 // pred_region
      %s298 = ssub.s32 128, 128
      %299 = vsyncadd [#allocation4], %s298
      %s301 = sshll.u32 [#allocation8], 4
      %s302 = int_to_ptr.vmem [resolvable:$true] %s301
      %304 = dma.vmem_to_hbm [thread:$0]  %s302, 128, %s5, [#allocation4]
    $region41: #{tpu_custom_call.1} parent=1 // pred_fallthru
      _
    // Predicated region
    $region42: #{tpu_custom_call.1} parent=1 // pred_check
      _
    $region43: #{tpu_custom_call.1} parent=1 // pred_check_branch
      %306 = sbr.rel (0) target = $region45
    $region44: #{tpu_custom_call.1} parent=1 // pred_region
      %307 = dma.done [#allocation4], 128
    $region45: #{tpu_custom_call.1} parent=1 // pred_fallthru
      _
    %308 = vsyncpa [#allocation3], 1
    %309 = vsyncpa [#allocation6], 1
    %310 = vsyncpa [#allocation4], 1

</llo_original>
